<compile_context>
chip_gen: v7x
topology: tpu7x:2x2x1
jax: 0.10.0
libtpu: 0.0.40
codegen_flags: <defaults>
</compile_context>

<pallas_src>
import numpy as np
import jax
import jax.numpy as jnp
from jax.experimental import pallas as pl
from jax.experimental.pallas import tpu as pltpu


# ----------------------------------------------------------------------------
# Pallas kernels
# ----------------------------------------------------------------------------

def _edge_prob_kernel(nnz_ref, att_ref, winv_ref, wshift_ref):
    """Fused edge-attention -> sampling-weight transforms, tiled over rows.

    winv   = exp(-(clamp(att, max=3) + 1e-8))      (== 1/exp(...), EUP op)
    wshift = att + 0.001
    Padding lanes are masked in-kernel from a broadcasted iota compared with
    the scalar-prefetched nnz (no mask array is shipped from the host).
    Final exact normalization happens host-side in float64 because
    np.random.choice requires an exactly-normalized float64 p anyway.
    """
    i = pl.program_id(0)
    tr, lanes = att_ref.shape
    row = jax.lax.broadcasted_iota(jnp.int32, (tr, lanes), 0)
    col = jax.lax.broadcasted_iota(jnp.int32, (tr, lanes), 1)
    flat = (i * tr + row) * lanes + col
    mask = (flat < nnz_ref[0]).astype(jnp.float32)
    att = att_ref[...]
    winv_ref[...] = mask * jnp.exp(-(jnp.minimum(att, 3.0) + 1e-8))
    wshift_ref[...] = mask * (att + 0.001)


def _coo_build_kernel(offs_ref, erow_ref, ecol_ref, eval_ref, out_ref):
    """Build one dense (tm, N_pad) row tile directly from a COO edge run.

    Edges are row-tile-sorted on the host; offs_ref gives the [start, stop)
    run for this (row_tile, batch) pair.  Per-edge values already carry the
    D^{-1/2} normalization, so no separate scale pass is needed.
    """
    t = pl.program_id(0)                      # row-tile axis (leads the grid)
    b = pl.program_id(1)                      # batch axis
    tile_id = b * pl.num_programs(0) + t

    out_ref[...] = jnp.zeros_like(out_ref)
    lane_ids = jax.lax.broadcasted_iota(jnp.int32, (1, out_ref.shape[1]), 1)

    start = offs_ref[tile_id]
    stop = offs_ref[tile_id + 1]

    def body(k, carry):
        r = erow_ref[k]                       # local row within this tile
        c = ecol_ref[k]
        v = eval_ref[k]
        row_vec = out_ref[pl.ds(r, 1), :]
        out_ref[pl.ds(r, 1), :] = row_vec + jnp.where(lane_ids == c, v, 0.0)
        return carry

    jax.lax.fori_loop(start, stop, body, 0)


# ----------------------------------------------------------------------------
# Pallas wrappers
# ----------------------------------------------------------------------------

def _edge_probs_pallas(att_np, nnz):
    """att_np: float numpy [nnz].  Returns (w_invexp, w_shift) numpy [nnz]."""
    L = 128
    r8 = max(8, -(-nnz // (L * 8)) * 8)        # rows, multiple of 8
    tr = min(512, r8)                          # row tile (keeps VMEM small)
    r_pad = -(-r8 // tr) * tr

    att_dev = jnp.asarray(np.asarray(att_np, np.float32))
    att_pad = jnp.pad(att_dev, (0, r_pad * L - nnz)).reshape(r_pad, L)
    nnz_arr = jnp.asarray(np.array([nnz], np.int32))

    winv, wshift = pl.pallas_call(
        _edge_prob_kernel,
        out_shape=(jax.ShapeDtypeStruct((r_pad, L), jnp.float32),
                   jax.ShapeDtypeStruct((r_pad, L), jnp.float32)),
        grid_spec=pltpu.PrefetchScalarGridSpec(
            num_scalar_prefetch=1,
            grid=(r_pad // tr,),
            in_specs=[pl.BlockSpec((tr, L), lambda i, nnz: (i, 0))],
            out_specs=(pl.BlockSpec((tr, L), lambda i, nnz: (i, 0)),
                       pl.BlockSpec((tr, L), lambda i, nnz: (i, 0))),
        ),
        compiler_params=pltpu.CompilerParams(
            dimension_semantics=("parallel",)),
    )(nnz_arr, att_pad)

    winv = np.asarray(winv).reshape(-1)[:nnz]
    wshift = np.asarray(wshift).reshape(-1)[:nnz]
    return winv, wshift


def _build_dense_pallas(edge_sets, n_pad):
    """edge_sets: list of (rows, cols, vals) numpy arrays (per-edge values
    already include any normalization).  Returns float32 [B, n_pad, n_pad]
    dense adjacencies, built in ONE batched pallas_call that streams each
    output row tile exactly once (no scatter pass, no scale pass).
    """
    B = len(edge_sets)

    # Row-tile size: power-of-two multiple of 8 (<=128) keeping the
    # (tm, n_pad) f32 tile under ~2 MiB so the double-buffered output
    # pipeline fits the scoped VMEM of every TPU generation.
    tm = 128
    while tm > 8 and tm * n_pad * 4 > (2 << 20):
        tm //= 2
    T = n_pad // tm

    counts = np.zeros((B, T), np.int64)
    er_list, ec_list, ev_list = [], [], []
    for b, (r, c, v) in enumerate(edge_sets):
        r = np.asarray(r, np.int64)
        c = np.asarray(c, np.int64)
        v = np.asarray(v, np.float32)
        tid = r // tm
        order = np.argsort(tid, kind="stable")
        r, c, v, tid = r[order], c[order], v[order], tid[order]
        counts[b] = np.bincount(tid, minlength=T)
        er_list.append((r - tid * tm).astype(np.int32))   # local row in tile
        ec_list.append(c.astype(np.int32))
        ev_list.append(v)

    offs = np.zeros((B * T + 1,), np.int32)
    offs[1:] = np.cumsum(counts.reshape(-1))
    erow = np.concatenate(er_list)
    ecol = np.concatenate(ec_list)
    evals = np.concatenate(ev_list)
    if erow.size == 0:                      # keep prefetch arrays non-empty
        erow = np.zeros((1,), np.int32)
        ecol = np.zeros((1,), np.int32)
        evals = np.zeros((1,), np.float32)

    # TODO(synk): edge lists live in SMEM via scalar prefetch; for graphs with
    # tens of millions of edges they should be streamed in DMA chunks instead.
    return pl.pallas_call(
        _coo_build_kernel,
        out_shape=jax.ShapeDtypeStruct((B, n_pad, n_pad), jnp.float32),
        grid_spec=pltpu.PrefetchScalarGridSpec(
            num_scalar_prefetch=4,
            grid=(T, B),                    # large row-tile axis leads (v7x)
            in_specs=[],
            out_specs=pl.BlockSpec((None, tm, n_pad),
                                   lambda t, b, offs, er, ec, ev: (b, t, 0)),
        ),
        compiler_params=pltpu.CompilerParams(
            dimension_semantics=("parallel", "parallel")),
    )(jnp.asarray(offs), jnp.asarray(erow), jnp.asarray(ecol),
      jnp.asarray(evals))


# ----------------------------------------------------------------------------
# Module
# ----------------------------------------------------------------------------

class RandomMaskSubgraphsPallas:
    """JAX/Pallas port of GFormer's RandomMaskSubgraphs.

    Sparse adjacencies are represented densely as [N, N] float32 arrays
    (N = num_users + num_items); returned tensors are the densified
    equivalents of the PyTorch sparse outputs.
    """

    def __init__(self, num_users, num_items, sub=0.1, keep_rate=0.9,
                 ext=0.5, re_rate=0.8, seed=0):
        self.num_users = num_users
        self.num_items = num_items
        self.N = num_users + num_items
        self.sub = sub
        self.keep_rate = keep_rate
        self.ext = ext
        self.re_rate = re_rate
        # Deterministic host RNG mirroring the reference's np.random.choice.
        self._rng = np.random.default_rng(seed)
        # Debug stash for external validation of the kernels.
        self.last_edge_sets = None
        self.last_edge_weights = None

    # -- helpers -------------------------------------------------------------

    def _normalized_edges(self, rows, cols):
        """Self-loops + edges with per-edge values d[r]*d[c] (d = deg^{-1/2},
        degree from the row counts with self-loops, matching the reference's
        rowsum-based symmetric-style normalization on a non-symmetric A)."""
        N = self.N
        rr = np.concatenate([np.arange(N, dtype=np.int64),
                             np.asarray(rows, np.int64)])
        cc = np.concatenate([np.arange(N, dtype=np.int64),
                             np.asarray(cols, np.int64)])
        deg = np.bincount(rr, minlength=N).astype(np.float64)
        d = np.where(deg > 0, deg ** -0.5, 0.0)
        vals = (d[rr] * d[cc]).astype(np.float32)
        return rr, cc, vals

    # -- forward -------------------------------------------------------------

    def forward(self, adj_rows, adj_cols, att_edge):
        """adj_rows / adj_cols: int numpy [nnz] COO indices, att_edge: float
        numpy [nnz].  Returns (encoderAdj, decoderAdj, sub, cmp) as dense
        [N, N] float32 jnp arrays."""
        N = self.N
        rows_up = np.asarray(adj_rows, dtype=np.int64)
        cols_up = np.asarray(adj_cols, dtype=np.int64)
        nnz = rows_up.shape[0]

        # --- fused edge-probability transform: ONE Pallas launch ------------
        w_inv, w_shift = _edge_probs_pallas(att_edge, nnz)
        self.last_edge_weights = (w_inv.copy(), w_shift.copy())
        # float64 exact normalization (required by np.random.choice); this is
        # the same host-side normalize-and-sample the reference does.
        p_invexp = w_inv.astype(np.float64)
        p_invexp /= p_invexp.sum()
        p_shift = w_shift.astype(np.float64)
        p_shift /= p_shift.sum()

        # --- encoder adjacency: keep_rate weighted subsample -----------------
        # TODO(synk): weighted sampling without replacement has no Pallas
        # equivalent; it stays host-side exactly as in the reference.
        keep_index = self._rng.choice(np.arange(nnz), int(nnz * self.keep_rate),
                                      replace=False, p=p_invexp)
        keep_index.sort()
        rows_k = rows_up[keep_index]
        cols_k = cols_up[keep_index]
        rows_full = np.concatenate([np.arange(N), rows_k])
        cols_full = np.concatenate([np.arange(N), cols_k])

        # --- decoder adjacency: dropped + extended edges, deduped -----------
        keep_mask = np.isin(np.arange(nnz), keep_index)
        drop_rows = rows_up[~keep_mask]
        drop_cols = cols_up[~keep_mask]
        ext_rows = self._rng.choice(rows_full, size=int(len(drop_rows) * self.ext))
        ext_cols = self._rng.choice(cols_full, size=int(len(drop_cols) * self.ext))
        tmp_rows = np.concatenate([ext_rows, drop_rows])
        tmp_cols = np.concatenate([ext_cols, drop_cols])
        new_rows = self._rng.choice(tmp_rows, size=int(nnz * self.re_rate))
        new_cols = self._rng.choice(tmp_cols, size=int(nnz * self.re_rate))
        newRows = np.concatenate([new_rows, new_cols, np.arange(N), rows_full])
        newCols = np.concatenate([new_cols, new_rows, np.arange(N), cols_full])
        # TODO(synk): torch.unique hash dedup is host-side np.unique (exactly
        # mirroring the reference); the dense build then uses the unique edges.
        hash_val = np.unique(newRows.astype(np.int64) * N +
                             newCols.astype(np.int64))
        dec_cols = hash_val % N
        dec_rows = (hash_val - dec_cols) // N

        # --- sub / cmp edge subsets ------------------------------------------
        sub_idx = self._rng.choice(np.arange(nnz), int(nnz * self.sub),
                                   replace=False, p=p_shift)
        sub_idx.sort()
        cmp_idx = self._rng.choice(np.arange(nnz), int(nnz * self.sub),
                                   replace=False, p=p_invexp)
        cmp_idx.sort()

        # --- one batched Pallas COO->dense build, D^{-1/2} folded in --------
        edge_sets = [
            self._normalized_edges(rows_k, cols_k),                       # enc
            (dec_rows, dec_cols,
             np.ones(dec_rows.shape[0], np.float32)),                     # dec
            self._normalized_edges(rows_up[sub_idx], cols_up[sub_idx]),   # sub
            self._normalized_edges(rows_up[cmp_idx], cols_up[cmp_idx]),   # cmp
        ]
        n_pad = ((N + 127) // 128) * 128
        dense = _build_dense_pallas(edge_sets, n_pad)
        dense = dense[:, :N, :N]            # slice padding back (no-op if aligned)

        self.last_edge_sets = {
            "encoder": (rows_k, cols_k),
            "decoder": (dec_rows, dec_cols),
            "sub": (rows_up[sub_idx], cols_up[sub_idx]),
            "cmp": (rows_up[cmp_idx], cols_up[cmp_idx]),
        }
        return dense[0], dense[1], dense[2], dense[3]


# ----------------------------------------------------------------------------
# Demo + validation
# ----------------------------------------------------------------------------

def _np_norm_dense(rows, cols, N):
    """Float64 numpy reference of the reference module's densified
    D^{-1/2} A D^{-1/2} with self-loops (duplicates summed)."""
    rr = np.concatenate([np.arange(N), np.asarray(rows, np.int64)])
    cc = np.concatenate([np.arange(N), np.asarray(cols, np.int64)])
    A = np.zeros((N, N), np.float64)
    np.add.at(A, (rr, cc), 1.0)
    d = A.sum(1) ** -0.5                     # rows always >=1 (self-loops)
    return d[:, None] * A * d[None, :]


if __name__ == "__main__":
    num_users, num_items = 48, 80            # N = 128
    N = num_users + num_items
    nnz = 300

    key = jax.random.PRNGKey(0)
    k_r, k_c, k_a = jax.random.split(key, 3)
    # bipartite user->item edges (users: [0, num_users), items: [num_users, N))
    adj_rows = np.asarray(jax.random.randint(k_r, (nnz,), 0, num_users))
    adj_cols = np.asarray(jax.random.randint(k_c, (nnz,), num_users, N))
    att_edge = np.asarray(jax.random.uniform(k_a, (nnz,), jnp.float32, 0.0, 2.0))

    module = RandomMaskSubgraphsPallas(num_users, num_items,
                                       sub=0.1, keep_rate=0.9,
                                       ext=0.5, re_rate=0.8, seed=0)
    encoderAdj, decoderAdj, sub, cmp_ = module.forward(adj_rows, adj_cols,
                                                       att_edge)
    jax.block_until_ready((encoderAdj, decoderAdj, sub, cmp_))

    # --- shape / dtype / finiteness sanity checks ---------------------------
    for out in (encoderAdj, decoderAdj, sub, cmp_):
        assert out.shape == (N, N) and out.dtype == jnp.float32
        assert bool(jnp.all(jnp.isfinite(out)))

    # --- validate the fused edge-probability kernel vs numpy ---------------
    w_inv, w_shift = module.last_edge_weights
    ref_inv = 1.0 / np.exp(np.minimum(att_edge, 3.0).astype(np.float64) + 1e-8)
    ref_shift = att_edge.astype(np.float64) + 0.001
    assert np.allclose(w_inv, ref_inv, rtol=1e-5, atol=1e-6)
    assert np.allclose(w_shift, ref_shift, rtol=1e-5, atol=1e-6)

    # --- validate the Pallas COO->dense normalized-adjacency builder -------
    es = module.last_edge_sets
    assert np.allclose(np.asarray(encoderAdj),
                       _np_norm_dense(*es["encoder"], N), rtol=1e-5, atol=1e-5)
    assert np.allclose(np.asarray(sub),
                       _np_norm_dense(*es["sub"], N), rtol=1e-5, atol=1e-5)
    assert np.allclose(np.asarray(cmp_),
                       _np_norm_dense(*es["cmp"], N), rtol=1e-5, atol=1e-5)
    dec_ref = np.zeros((N, N), np.float64)
    dec_ref[es["decoder"][0], es["decoder"][1]] = 1.0
    assert np.allclose(np.asarray(decoderAdj), dec_ref, rtol=0, atol=1e-6)

    print("KERNEL_OK")
</pallas_src>

<mosaic_0001>
module attributes {stable_mosaic.version = 11 : i64} {
  func.func @_edge_prob_kernel(%arg0: i32, %arg1: memref<1xi32, #tpu.memory_space<smem>>, %arg2: memref<8x128xf32, #tpu.memory_space<vmem>>, %arg3: memref<8x128xf32, #tpu.memory_space<vmem>>, %arg4: memref<8x128xf32, #tpu.memory_space<vmem>>) attributes {dimension_semantics = [#tpu.dimension_semantics<parallel>], iteration_bounds = array<i64: 1>, scalar_prefetch = 1 : i64, scratch_operands = 0 : i64, tpu.core_type = #tpu.core_type<tc>, window_params = [{transform_indices = @transform_0, window_bounds = array<i64: 8, 128>}, {transform_indices = @transform_1, window_bounds = array<i64: 8, 128>}, {transform_indices = @transform_2, window_bounds = array<i64: 8, 128>}]} {
    %0 = tpu.iota {dimensions = array<i32: 0>} : vector<8x128xi32>
    %1 = tpu.iota {dimensions = array<i32: 1>} : vector<8x128xi32>
    %c8_i32 = arith.constant 8 : i32
    %2 = arith.muli %arg0, %c8_i32 : i32
    %3 = vector.broadcast %2 : i32 to vector<8x128xi32>
    %4 = arith.addi %3, %0 : vector<8x128xi32>
    %c128_i32 = arith.constant 128 : i32
    %5 = vector.broadcast %c128_i32 : i32 to vector<8x128xi32>
    %6 = arith.muli %4, %5 : vector<8x128xi32>
    %7 = arith.addi %6, %1 : vector<8x128xi32>
    %c0 = arith.constant 0 : index
    %8 = memref.load %arg1[%c0] : memref<1xi32, #tpu.memory_space<smem>>
    %9 = vector.broadcast %8 : i32 to vector<8x128xi32>
    %10 = arith.cmpi slt, %7, %9 : vector<8x128xi32>
    %11 = arith.extui %10 : vector<8x128xi1> to vector<8x128xi32>
    %12 = arith.sitofp %11 : vector<8x128xi32> to vector<8x128xf32>
    %c0_0 = arith.constant 0 : index
    %c0_1 = arith.constant 0 : index
    %13 = vector.load %arg2[%c0_0, %c0_1] : memref<8x128xf32, #tpu.memory_space<vmem>>, vector<8x128xf32>
    %cst = arith.constant 3.000000e+00 : f32
    %14 = vector.broadcast %cst : f32 to vector<8x128xf32>
    %15 = arith.minimumf %13, %14 : vector<8x128xf32>
    %cst_2 = arith.constant 9.99999993E-9 : f32
    %16 = vector.broadcast %cst_2 : f32 to vector<8x128xf32>
    %17 = arith.addf %15, %16 : vector<8x128xf32>
    %cst_3 = arith.constant 0.000000e+00 : f32
    %18 = vector.broadcast %cst_3 : f32 to vector<8x128xf32>
    %19 = arith.subf %18, %17 : vector<8x128xf32>
    %20 = math.exp %19 : vector<8x128xf32>
    %21 = arith.mulf %12, %20 : vector<8x128xf32>
    %c0_4 = arith.constant 0 : index
    %c0_5 = arith.constant 0 : index
    %22 = vector.load %arg3[%c0_4, %c0_5] : memref<8x128xf32, #tpu.memory_space<vmem>>, vector<8x128xf32>
    tpu.vector_store %arg3[%c0_4, %c0_5], %21 {strides = array<i32>} : memref<8x128xf32, #tpu.memory_space<vmem>>, vector<8x128xf32>,
    %cst_6 = arith.constant 1.000000e-03 : f32
    %23 = vector.broadcast %cst_6 : f32 to vector<8x128xf32>
    %24 = arith.addf %13, %23 : vector<8x128xf32>
    %25 = arith.mulf %12, %24 : vector<8x128xf32>
    %c0_7 = arith.constant 0 : index
    %c0_8 = arith.constant 0 : index
    %26 = vector.load %arg4[%c0_7, %c0_8] : memref<8x128xf32, #tpu.memory_space<vmem>>, vector<8x128xf32>
    tpu.vector_store %arg4[%c0_7, %c0_8], %25 {strides = array<i32>} : memref<8x128xf32, #tpu.memory_space<vmem>>, vector<8x128xf32>,
    return
  }
  func.func @transform_0(%arg0: i32, %arg1: memref<1xi32, #tpu.memory_space<smem>>) -> (i32, i32) {
    %c0_i32 = arith.constant 0 : i32
    %c0_i32_0 = arith.constant 0 : i32
    return %arg0, %c0_i32 : i32, i32
  }
  func.func @transform_1(%arg0: i32, %arg1: memref<1xi32, #tpu.memory_space<smem>>) -> (i32, i32) {
    %c0_i32 = arith.constant 0 : i32
    %c0_i32_0 = arith.constant 0 : i32
    return %arg0, %c0_i32 : i32, i32
  }
  func.func @transform_2(%arg0: i32, %arg1: memref<1xi32, #tpu.memory_space<smem>>) -> (i32, i32) {
    %c0_i32 = arith.constant 0 : i32
    %c0_i32_0 = arith.constant 0 : i32
    return %arg0, %c0_i32 : i32, i32
  }
}

</mosaic_0001>

<llo_original>
// kernel: tpu_custom_call.1
$region0: #{tpu_custom_call.1}
  #allocation0 [shape = 'u32[]', space=smem, size = 0x4, offset = 0x4, fixed_abs, tag = 'smem constant byte address 0x4 - core index']
  #allocation1 [shape = 'u32[144,128]{1,0:T(1,128)}', space=vmem, size = 0x12000, scoped, tag = 'internal scratch']
  #allocation2 [shape = 's32[1]{0}', space=sflag, size = 0x4, scoped, tag = 'scoped memory for tpu_custom_call.1']
  #allocation3 [shape = 's32[1]{0:T(128)S(6)}', space=smem, size = 0x200, scoped, tag = 'prefetched SMEM operand 0']
  %s0 = inlined_call_operand.<no memory space> [shape: s32[1], index: 0, kind: input, shape index: {}]
  %s1 = inlined_call_operand.hbm [shape: f32[8,128], index: 1, kind: input, shape index: {}]
  %s2 = inlined_call_operand.hbm [shape: f32[8,128], index: 2, kind: output, shape index: {0}]
  %s3 = inlined_call_operand.hbm [shape: f32[8,128], index: 3, kind: output, shape index: {1}]
  %4 = xla_tuple %s2, %s3
  %s5 = sld [smem:[#allocation0]]
  $region26: #{tpu_custom_call.1} parent=0
    _
  %s7 = ssub.s32 1, %s5
  %s8 = scalar_select 0, %s7, %s5
  %9 = sst [smem:[#allocation3]] %s0
  $region1: #{tpu_custom_call.1} parent=0
    #allocation4 [shape = 'u8[4096]{0}', space=vmem, size = 0x1000, scoped, tag = 'input window, operand 1, single buffered']
    #allocation5 [shape = 's32[1]{0}', space=sflag, size = 0x4, scoped, tag = 'scoped memory for tpu_custom_call.1']
    #allocation6 [shape = 's32[1]{0}', space=sflag, size = 0x4, scoped, tag = 'scoped memory for tpu_custom_call.1']
    #allocation7 [shape = 'u8[4096]{0}', space=vmem, size = 0x1000, scoped, tag = 'output window, operand 0, single buffered']
    #allocation8 [shape = 'u8[4096]{0}', space=vmem, size = 0x1000, scoped, tag = 'output window, operand 1, single buffered']
    #allocation9 [shape = 's32[1]{0}', space=sflag, size = 0x4, scoped, tag = 'scoped memory for tpu_custom_call.1']
    %10 = vsyncpa [#allocation5], 0
    %11 = vsyncpa [#allocation6], 0
    %12 = vsyncpa [#allocation9], 0
    // Predicated region
    $region2: #{tpu_custom_call.1} parent=1 // pred_check
      _
    $region3: #{tpu_custom_call.1} parent=1 // pred_check_branch
      %14 = sbr.rel (0) target = $region5
    $region4: #{tpu_custom_call.1} parent=1 // pred_region
      %s16 = ssub.s32 128, 128
      %17 = vsyncadd [#allocation5], %s16
      %s19 = sshll.u32 [#allocation4], 4
      %s20 = int_to_ptr.vmem [resolvable:$true] %s19
      %22 = dma.hbm_to_vmem [thread:$0]  %s1, 128, %s20, [#allocation5]
    $region5: #{tpu_custom_call.1} parent=1 // pred_fallthru
      _
    // Predicated region
    $region6: #{tpu_custom_call.1} parent=1 // pred_check
      _
    $region7: #{tpu_custom_call.1} parent=1 // pred_check_branch
      %24 = sbr.rel (0) target = $region9
    $region8: #{tpu_custom_call.1} parent=1 // pred_region
      %25 = dma.done [#allocation5], 128
    $region9: #{tpu_custom_call.1} parent=1 // pred_fallthru
      _
    %v26 = vlaneseq
    %v27 = vshrl.u32 %v26, 7
    %v28 = vlaneseq
    %v29 = vand.u32 %v28, 127
    %s30 = smul.u32 0, 8
    %v31 = vstv %s30
    %v32 = vadd.s32 %v31, %v27
    %v33 = vmul.u32 %v32, 128
    %v34 = vadd.s32 %v33, %v29
    %s35 = sld [smem:[#allocation3]]
    %v36 = vstv %s35
    %vm37 = vcmp.lt.s32.totalorder %v34, %v36
    %v38 = vsel %vm37, 1, 0
    %v39 = vcvt.s32.f32 %v38
    %v40 = vld [vmem:[#allocation4] sm:$0xff]
    %v41 = vmin.f32 %v40, 3.0
    %v42 = vadd.f32 %v41, 1e-08
    %v43 = vsub.f32 0.0, %v42
    %v44 = vmul.f32 %v43, 1.442695
    %v45 = vpow.pop %v44
    %v46 = vmul.f32 %v39, %v45
    %47 = vst [vmem:[#allocation7] sm:$0xff] %v46
    %v48 = vadd.f32 %v40, 0.001
    %v49 = vmul.f32 %v39, %v48
    %50 = vst [vmem:[#allocation8] sm:$0xff] %v49
    // Predicated region
    $region10: #{tpu_custom_call.1} parent=1 // pred_check
      _
    $region11: #{tpu_custom_call.1} parent=1 // pred_check_branch
      %52 = sbr.rel (0) target = $region13
    $region12: #{tpu_custom_call.1} parent=1 // pred_region
      %s54 = ssub.s32 128, 128
      %55 = vsyncadd [#allocation6], %s54
      %s57 = sshll.u32 [#allocation7], 4
      %s58 = int_to_ptr.vmem [resolvable:$true] %s57
      %60 = dma.vmem_to_hbm [thread:$0]  %s58, 128, %s2, [#allocation6]
    $region13: #{tpu_custom_call.1} parent=1 // pred_fallthru
      _
    // Predicated region
    $region14: #{tpu_custom_call.1} parent=1 // pred_check
      _
    $region15: #{tpu_custom_call.1} parent=1 // pred_check_branch
      %62 = sbr.rel (0) target = $region17
    $region16: #{tpu_custom_call.1} parent=1 // pred_region
      %s64 = ssub.s32 128, 128
      %65 = vsyncadd [#allocation9], %s64
      %s67 = sshll.u32 [#allocation8], 4
      %s68 = int_to_ptr.vmem [resolvable:$true] %s67
      %70 = dma.vmem_to_hbm [thread:$0]  %s68, 128, %s3, [#allocation9]
    $region17: #{tpu_custom_call.1} parent=1 // pred_fallthru
      _
    // Predicated region
    $region18: #{tpu_custom_call.1} parent=1 // pred_check
      _
    $region19: #{tpu_custom_call.1} parent=1 // pred_check_branch
      %72 = sbr.rel (0) target = $region21
    $region20: #{tpu_custom_call.1} parent=1 // pred_region
      %73 = dma.done [#allocation6], 128
    $region21: #{tpu_custom_call.1} parent=1 // pred_fallthru
      _
    // Predicated region
    $region22: #{tpu_custom_call.1} parent=1 // pred_check
      _
    $region23: #{tpu_custom_call.1} parent=1 // pred_check_branch
      %75 = sbr.rel (0) target = $region25
    $region24: #{tpu_custom_call.1} parent=1 // pred_region
      %76 = dma.done [#allocation9], 128
    $region25: #{tpu_custom_call.1} parent=1 // pred_fallthru
      _
    %77 = vsyncpa [#allocation5], 1
    %78 = vsyncpa [#allocation6], 1
    %79 = vsyncpa [#allocation9], 1

</llo_original>
